<compile_context>
chip_gen: v7x
topology: tpu7x:2x2x1
jax: 0.10.0
libtpu: 0.0.40
codegen_flags: <defaults>
</compile_context>

<pallas_src>
import jax
import jax.numpy as jnp
from jax import lax
from jax.experimental import pallas as pl
from jax.experimental.pallas import tpu as pltpu

HIDDEN = 256
LN_EPS = 1e-5
LEAK = 0.01
PAD_BIAS = -1e30        # padded logits -> exp() == 0 exactly


def _round_up(x, m):
    return ((x + m - 1) // m) * m


def _leaky_relu(x):
    # mul + max (2 VALU ops / elem) instead of cmp + select + mul (3).
    return jnp.maximum(x, LEAK * x)


def _layer_norm_stats_only(x):
    # Affine (gamma/beta) is folded into the following Linear offline, so the
    # kernel only normalizes.  Single-pass statistics (var = E[x^2] - mu^2,
    # PyTorch's biased variance), clamped >= 0 against f32 cancellation.
    mu = jnp.mean(x, axis=-1, keepdims=True)
    var = jnp.maximum(jnp.mean(x * x, axis=-1, keepdims=True) - mu * mu, 0.0)
    return (x - mu) * lax.rsqrt(var + LN_EPS)


def actor_kernel(x_ref,
                 w1_ref, b1_ref,
                 w2_ref, b2_ref,
                 w3_ref, b3_ref,
                 out_ref):
    # Matmul inputs follow the weight dtype (f32, or bf16 for the native MXU
    # path on every generation); elementwise math stays in f32.
    mm_dtype = w1_ref.dtype
    x = x_ref[...].astype(mm_dtype)

    # --- Layer 1: Linear + LeakyReLU + LayerNorm (affine folded into W2/b2) ---
    h = jnp.dot(x, w1_ref[...], preferred_element_type=jnp.float32)
    h = _leaky_relu(h + b1_ref[...])
    h = _layer_norm_stats_only(h)

    # --- Layer 2: Linear + LeakyReLU + LayerNorm (affine folded into W3/b3) ---
    h = jnp.dot(h.astype(mm_dtype), w2_ref[...],
                preferred_element_type=jnp.float32)
    h = _leaky_relu(h + b2_ref[...])
    h = _layer_norm_stats_only(h)

    # --- Output: Linear + Softmax over a lane-dense (padded-to-128) block ---
    logits = jnp.dot(h.astype(mm_dtype), w3_ref[...],
                     preferred_element_type=jnp.float32)
    logits = logits + b3_ref[...]          # padded lanes carry bias = -1e30
    m = jnp.max(logits, axis=-1, keepdims=True)
    e = jnp.exp(logits - m)                # padded lanes underflow to exactly 0
    s = jnp.sum(e, axis=-1, keepdims=True)
    # Exact division keeps sum-to-1 within f32 rounding.
    out_ref[...] = (e / s).astype(out_ref.dtype)


def _fold_and_pad_params(params, n_pad):
    """Fold each LayerNorm's affine into the following Linear and pad the
    output projection to a lane-dense width:
        W2' = diag(g1) @ W2,  b2' = b2 + be1 @ W2
        W3' = diag(g2) @ W3,  b3' = b3 + be2 @ W3
        W3' zero-padded to n_pad columns; padded b3' entries get -1e30.
    The fold is done in f32 and cast back to the original weight dtype."""
    (w1, b1, g1, be1, w2, b2, g2, be2, w3, b3) = params
    mm_dtype = w1.dtype
    f32 = jnp.float32

    w2f = (g1.reshape(-1, 1).astype(f32) * w2.astype(f32)).astype(mm_dtype)
    b2f = b2.astype(f32) + be1.astype(f32) @ w2.astype(f32)
    w3f = (g2.reshape(-1, 1).astype(f32) * w3.astype(f32)).astype(mm_dtype)
    b3f = b3.astype(f32) + be2.astype(f32) @ w3.astype(f32)

    n_actions = w3.shape[1]
    pad_n = n_pad - n_actions
    if pad_n:
        w3f = jnp.pad(w3f, ((0, 0), (0, pad_n)))
        b3f = jnp.pad(b3f, ((0, 0), (0, pad_n)), constant_values=PAD_BIAS)
    return (w1, b1.astype(f32), w2f, b2f, w3f, b3f)


def actor_network_forward(state, params, *, block_batch=2048):
    """state: (B, state_dim) float32 -> probs: (B, n_actions) float32.

    block_batch: batch-tile size.  Per-tile VMEM at tb=2048 is only ~3-4 MiB
    (x/h/out in f32 + bf16 matmul copies) plus <0.6 MiB of resident weights,
    far inside every generation's scoped-VMEM default; larger tiles amortize
    the ~0.35 us per-grid-step overhead of this elementwise-bound kernel.
    """
    B, state_dim = state.shape
    w3 = params[8]
    n_actions = w3.shape[1]
    n_pad = _round_up(n_actions, 128)       # lane-dense output width

    # Batch tile: multiple of 8 sublanes; guarantee >=2 grid steps whenever
    # the batch allows it so ("parallel",) shards across both v7x TensorCores
    # (no-op on single-TC v5e/v6e).
    b_rounded = _round_up(B, 8)
    tb = min(_round_up(block_batch, 8), b_rounded)
    if b_rounded >= 16 and tb >= b_rounded:
        tb = _round_up(b_rounded // 2, 8)

    pad = (-B) % tb
    state_in = jnp.pad(state, ((0, pad), (0, 0))) if pad else state
    Bp = state_in.shape[0]
    grid = (Bp // tb,)

    prepped = _fold_and_pad_params(params, n_pad)

    in_specs = [pl.BlockSpec((tb, state_dim), lambda i: (i, 0))]
    # Weights / biases: full block, same index every step -> VMEM-resident
    # across the (parallel) batch grid.
    in_specs += [pl.BlockSpec(p.shape, lambda i: (0, 0)) for p in prepped]
    out_spec = pl.BlockSpec((tb, n_pad), lambda i: (i, 0))

    flops = 2 * Bp * (state_dim * HIDDEN + HIDDEN * HIDDEN + HIDDEN * n_pad)
    transcendentals = Bp * (n_pad + 2)       # softmax exp + 2 rsqrt per row
    bytes_accessed = (
        state_in.size * state_in.dtype.itemsize
        + sum(int(p.size) * p.dtype.itemsize for p in prepped)
        + Bp * n_pad * 4
    )

    out = pl.pallas_call(
        actor_kernel,
        out_shape=jax.ShapeDtypeStruct((Bp, n_pad), jnp.float32),
        grid=grid,
        in_specs=in_specs,
        out_specs=out_spec,
        compiler_params=pltpu.CompilerParams(
            dimension_semantics=("parallel",)),       # v7x megacore split
        cost_estimate=pl.CostEstimate(
            flops=int(flops),
            transcendentals=int(transcendentals),
            bytes_accessed=int(bytes_accessed)),
    )(state_in, *prepped)
    return out[:B, :n_actions]


def cast_weights_for_mxu(params, dtype=jnp.bfloat16):
    """Cast only the matmul weight matrices to bf16 — the native MXU dtype on
    every generation (v5e / v6e / v7x).  Biases and LayerNorm params stay f32
    for the elementwise path (v5e's VPU/EUP have no bf16)."""
    (w1, b1, g1, be1, w2, b2, g2, be2, w3, b3) = params
    return (w1.astype(dtype), b1, g1, be1,
            w2.astype(dtype), b2, g2, be2,
            w3.astype(dtype), b3)


def init_params(key, state_dim, n_actions):
    """Init mimicking PyTorch Linear default (U(-1/sqrt(fan_in), ...)).
    Linear weights are stored (in_features, out_features) so the kernel
    computes x @ W + b (== PyTorch's x @ W.T with (out, in) W)."""
    def linear(key, fan_in, fan_out):
        kw, kb = jax.random.split(key)
        bound = 1.0 / jnp.sqrt(fan_in)
        w = jax.random.uniform(kw, (fan_in, fan_out), jnp.float32, -bound, bound)
        b = jax.random.uniform(kb, (1, fan_out), jnp.float32, -bound, bound)
        return w, b

    k1, k2, k3 = jax.random.split(key, 3)
    w1, b1 = linear(k1, state_dim, HIDDEN)
    w2, b2 = linear(k2, HIDDEN, HIDDEN)
    w3, b3 = linear(k3, HIDDEN, n_actions)
    # LayerNorm: gamma = 1, beta = 0 (PyTorch default)
    g1 = jnp.ones((1, HIDDEN), jnp.float32)
    be1 = jnp.zeros((1, HIDDEN), jnp.float32)
    g2 = jnp.ones((1, HIDDEN), jnp.float32)
    be2 = jnp.zeros((1, HIDDEN), jnp.float32)
    return (w1, b1, g1, be1, w2, b2, g2, be2, w3, b3)


def _layer_norm_ref(x, gamma, beta):
    mu = jnp.mean(x, axis=-1, keepdims=True)
    var = jnp.mean((x - mu) * (x - mu), axis=-1, keepdims=True)
    return (x - mu) * lax.rsqrt(var + LN_EPS) * gamma + beta


def _reference(state, params):
    """Plain-JAX reference (f32, full LayerNorm affine, no folding)."""
    (w1, b1, g1, be1, w2, b2, g2, be2, w3, b3) = params
    dot = lambda a, b: jnp.dot(a, b, precision=lax.Precision.HIGHEST,
                               preferred_element_type=jnp.float32)
    h = jnp.where(state @ w1 + b1 > 0, state @ w1 + b1, LEAK * (state @ w1 + b1))
    h = _leaky_relu(dot(state, w1) + b1)
    h = _layer_norm_ref(h, g1, be1)
    h = _leaky_relu(dot(h, w2) + b2)
    h = _layer_norm_ref(h, g2, be2)
    logits = dot(h, w3) + b3
    return jax.nn.softmax(logits, axis=-1)


if __name__ == "__main__":
    key = jax.random.PRNGKey(0)
    k_params, k_state, kg1, kb1, kg2, kb2 = jax.random.split(key, 6)

    state_dim = 16
    n_actions = 8
    batch = 64            # -> tb=32, 2-step "parallel" grid gets exercised

    params = init_params(k_params, state_dim, n_actions)
    # Replace the default gamma=1/beta=0 with non-trivial values so the
    # offline LN-affine fold is actually tested against the reference.
    (w1, b1, _, _, w2, b2, _, _, w3, b3) = params
    g1 = 1.0 + 0.1 * jax.random.normal(kg1, (1, HIDDEN), jnp.float32)
    be1 = 0.05 * jax.random.normal(kb1, (1, HIDDEN), jnp.float32)
    g2 = 1.0 + 0.1 * jax.random.normal(kg2, (1, HIDDEN), jnp.float32)
    be2 = 0.05 * jax.random.normal(kb2, (1, HIDDEN), jnp.float32)
    params = (w1, b1, g1, be1, w2, b2, g2, be2, w3, b3)

    state = jax.random.normal(k_state, (batch, state_dim), jnp.float32)
    ref = _reference(state, params)

    # f32 path: matches the plain-JAX reference tightly (the LN-affine fold
    # and lane padding are exact up to f32 rounding).
    probs = actor_network_forward(state, params)
    probs = jax.block_until_ready(probs)
    assert probs.shape == (batch, n_actions)
    assert jnp.allclose(jnp.sum(probs, axis=-1), 1.0, atol=1e-5)
    assert jnp.allclose(probs, ref, atol=2e-5, rtol=2e-4)

    # bf16-weight path (native MXU dtype on all generations): looser tolerance
    # is the expected precision loss.  Softmax still sums to 1 because the
    # normalization division stays in f32 and padded lanes are exactly 0.
    probs_bf16 = actor_network_forward(state, cast_weights_for_mxu(params))
    probs_bf16 = jax.block_until_ready(probs_bf16)
    assert jnp.allclose(jnp.sum(probs_bf16, axis=-1), 1.0, atol=1e-5)
    assert jnp.allclose(probs_bf16, ref, atol=5e-2, rtol=5e-2)

    print("KERNEL_OK")
</pallas_src>

<mosaic_0001>
module attributes {stable_mosaic.version = 11 : i64} {
  func.func @actor_kernel(%arg0: i32, %arg1: memref<32x16xf32, #tpu.memory_space<vmem>>, %arg2: memref<16x256xf32, #tpu.memory_space<vmem>>, %arg3: memref<1x256xf32, #tpu.memory_space<vmem>>, %arg4: memref<256x256xf32, #tpu.memory_space<vmem>>, %arg5: memref<1x256xf32, #tpu.memory_space<vmem>>, %arg6: memref<256x128xf32, #tpu.memory_space<vmem>>, %arg7: memref<1x128xf32, #tpu.memory_space<vmem>>, %arg8: memref<32x128xf32, #tpu.memory_space<vmem>>) attributes {dimension_semantics = [#tpu.dimension_semantics<parallel>], iteration_bounds = array<i64: 2>, scalar_prefetch = 0 : i64, scratch_operands = 0 : i64, tpu.core_type = #tpu.core_type<tc>, window_params = [{transform_indices = @transform_0, window_bounds = array<i64: 32, 16>}, {pipeline_mode = #tpu.pipeline_mode<synchronous>, transform_indices = @transform_1, window_bounds = array<i64: 16, 256>}, {pipeline_mode = #tpu.pipeline_mode<synchronous>, transform_indices = @transform_2, window_bounds = array<i64: 1, 256>}, {pipeline_mode = #tpu.pipeline_mode<synchronous>, transform_indices = @transform_3, window_bounds = array<i64: 256, 256>}, {pipeline_mode = #tpu.pipeline_mode<synchronous>, transform_indices = @transform_4, window_bounds = array<i64: 1, 256>}, {pipeline_mode = #tpu.pipeline_mode<synchronous>, transform_indices = @transform_5, window_bounds = array<i64: 256, 128>}, {pipeline_mode = #tpu.pipeline_mode<synchronous>, transform_indices = @transform_6, window_bounds = array<i64: 1, 128>}, {transform_indices = @transform_7, window_bounds = array<i64: 32, 128>}]} {
    %c0 = arith.constant 0 : index
    %c0_0 = arith.constant 0 : index
    %0 = vector.load %arg1[%c0, %c0_0] : memref<32x16xf32, #tpu.memory_space<vmem>>, vector<32x16xf32>
    %c0_1 = arith.constant 0 : index
    %c0_2 = arith.constant 0 : index
    %1 = vector.load %arg2[%c0_1, %c0_2] : memref<16x256xf32, #tpu.memory_space<vmem>>, vector<16x256xf32>
    %cst = arith.constant dense<0.000000e+00> : vector<32x256xf32>
    %2 = tpu.matmul %0, %1, %cst {dimension_numbers = #tpu.dot_dimension_numbers<[1], [0], [0], [1], [0, 0, 1, 1], [], []>} : vector<32x16xf32>, vector<16x256xf32>, vector<32x256xf32> -> vector<32x256xf32>
    %c0_3 = arith.constant 0 : index
    %c0_4 = arith.constant 0 : index
    %3 = vector.load %arg3[%c0_3, %c0_4] : memref<1x256xf32, #tpu.memory_space<vmem>>, vector<1x256xf32>
    %4 = vector.broadcast %3 : vector<1x256xf32> to vector<32x256xf32>
    %5 = arith.addf %2, %4 : vector<32x256xf32>
    %cst_5 = arith.constant 0.00999999977 : f32
    %6 = vector.broadcast %cst_5 : f32 to vector<32x256xf32>
    %7 = arith.mulf %6, %5 : vector<32x256xf32>
    %8 = arith.maximumf %5, %7 : vector<32x256xf32>
    %cst_6 = arith.constant dense<0.000000e+00> : vector<32xf32>
    %9 = vector.multi_reduction <add>, %8, %cst_6 [1] : vector<32x256xf32> to vector<32xf32>
    %10 = vector.shape_cast %9 : vector<32xf32> to vector<32x1xf32>
    %cst_7 = arith.constant 2.560000e+02 : f32
    %11 = vector.broadcast %cst_7 : f32 to vector<32x1xf32>
    %12 = arith.divf %10, %11 : vector<32x1xf32>
    %13 = arith.mulf %8, %8 : vector<32x256xf32>
    %cst_8 = arith.constant dense<0.000000e+00> : vector<32xf32>
    %14 = vector.multi_reduction <add>, %13, %cst_8 [1] : vector<32x256xf32> to vector<32xf32>
    %15 = vector.shape_cast %14 : vector<32xf32> to vector<32x1xf32>
    %cst_9 = arith.constant 2.560000e+02 : f32
    %16 = vector.broadcast %cst_9 : f32 to vector<32x1xf32>
    %17 = arith.divf %15, %16 : vector<32x1xf32>
    %18 = arith.mulf %12, %12 : vector<32x1xf32>
    %19 = arith.subf %17, %18 : vector<32x1xf32>
    %cst_10 = arith.constant 0.000000e+00 : f32
    %20 = vector.broadcast %cst_10 : f32 to vector<32x1xf32>
    %21 = arith.maximumf %19, %20 : vector<32x1xf32>
    %22 = vector.broadcast %12 : vector<32x1xf32> to vector<32x256xf32>
    %23 = arith.subf %8, %22 : vector<32x256xf32>
    %cst_11 = arith.constant 9.99999974E-6 : f32
    %24 = vector.broadcast %cst_11 : f32 to vector<32x1xf32>
    %25 = arith.addf %21, %24 : vector<32x1xf32>
    %26 = math.rsqrt %25 : vector<32x1xf32>
    %27 = vector.broadcast %26 : vector<32x1xf32> to vector<32x256xf32>
    %28 = arith.mulf %23, %27 : vector<32x256xf32>
    %c0_12 = arith.constant 0 : index
    %c0_13 = arith.constant 0 : index
    %29 = vector.load %arg4[%c0_12, %c0_13] : memref<256x256xf32, #tpu.memory_space<vmem>>, vector<256x256xf32>
    %cst_14 = arith.constant dense<0.000000e+00> : vector<32x256xf32>
    %30 = tpu.matmul %28, %29, %cst_14 {dimension_numbers = #tpu.dot_dimension_numbers<[1], [0], [0], [1], [0, 0, 1, 1], [], []>} : vector<32x256xf32>, vector<256x256xf32>, vector<32x256xf32> -> vector<32x256xf32>
    %c0_15 = arith.constant 0 : index
    %c0_16 = arith.constant 0 : index
    %31 = vector.load %arg5[%c0_15, %c0_16] : memref<1x256xf32, #tpu.memory_space<vmem>>, vector<1x256xf32>
    %32 = vector.broadcast %31 : vector<1x256xf32> to vector<32x256xf32>
    %33 = arith.addf %30, %32 : vector<32x256xf32>
    %cst_17 = arith.constant 0.00999999977 : f32
    %34 = vector.broadcast %cst_17 : f32 to vector<32x256xf32>
    %35 = arith.mulf %34, %33 : vector<32x256xf32>
    %36 = arith.maximumf %33, %35 : vector<32x256xf32>
    %cst_18 = arith.constant dense<0.000000e+00> : vector<32xf32>
    %37 = vector.multi_reduction <add>, %36, %cst_18 [1] : vector<32x256xf32> to vector<32xf32>
    %38 = vector.shape_cast %37 : vector<32xf32> to vector<32x1xf32>
    %cst_19 = arith.constant 2.560000e+02 : f32
    %39 = vector.broadcast %cst_19 : f32 to vector<32x1xf32>
    %40 = arith.divf %38, %39 : vector<32x1xf32>
    %41 = arith.mulf %36, %36 : vector<32x256xf32>
    %cst_20 = arith.constant dense<0.000000e+00> : vector<32xf32>
    %42 = vector.multi_reduction <add>, %41, %cst_20 [1] : vector<32x256xf32> to vector<32xf32>
    %43 = vector.shape_cast %42 : vector<32xf32> to vector<32x1xf32>
    %cst_21 = arith.constant 2.560000e+02 : f32
    %44 = vector.broadcast %cst_21 : f32 to vector<32x1xf32>
    %45 = arith.divf %43, %44 : vector<32x1xf32>
    %46 = arith.mulf %40, %40 : vector<32x1xf32>
    %47 = arith.subf %45, %46 : vector<32x1xf32>
    %cst_22 = arith.constant 0.000000e+00 : f32
    %48 = vector.broadcast %cst_22 : f32 to vector<32x1xf32>
    %49 = arith.maximumf %47, %48 : vector<32x1xf32>
    %50 = vector.broadcast %40 : vector<32x1xf32> to vector<32x256xf32>
    %51 = arith.subf %36, %50 : vector<32x256xf32>
    %cst_23 = arith.constant 9.99999974E-6 : f32
    %52 = vector.broadcast %cst_23 : f32 to vector<32x1xf32>
    %53 = arith.addf %49, %52 : vector<32x1xf32>
    %54 = math.rsqrt %53 : vector<32x1xf32>
    %55 = vector.broadcast %54 : vector<32x1xf32> to vector<32x256xf32>
    %56 = arith.mulf %51, %55 : vector<32x256xf32>
    %c0_24 = arith.constant 0 : index
    %c0_25 = arith.constant 0 : index
    %57 = vector.load %arg6[%c0_24, %c0_25] : memref<256x128xf32, #tpu.memory_space<vmem>>, vector<256x128xf32>
    %cst_26 = arith.constant dense<0.000000e+00> : vector<32x128xf32>
    %58 = tpu.matmul %56, %57, %cst_26 {dimension_numbers = #tpu.dot_dimension_numbers<[1], [0], [0], [1], [0, 0, 1, 1], [], []>} : vector<32x256xf32>, vector<256x128xf32>, vector<32x128xf32> -> vector<32x128xf32>
    %c0_27 = arith.constant 0 : index
    %c0_28 = arith.constant 0 : index
    %59 = vector.load %arg7[%c0_27, %c0_28] : memref<1x128xf32, #tpu.memory_space<vmem>>, vector<1x128xf32>
    %60 = vector.broadcast %59 : vector<1x128xf32> to vector<32x128xf32>
    %61 = arith.addf %58, %60 : vector<32x128xf32>
    %cst_29 = arith.constant dense<0xFF800000> : vector<32xf32>
    %62 = vector.multi_reduction <maximumf>, %61, %cst_29 [1] : vector<32x128xf32> to vector<32xf32>
    %63 = vector.shape_cast %62 : vector<32xf32> to vector<32x1xf32>
    %64 = vector.broadcast %63 : vector<32x1xf32> to vector<32x128xf32>
    %65 = arith.subf %61, %64 : vector<32x128xf32>
    %66 = math.exp %65 : vector<32x128xf32>
    %cst_30 = arith.constant dense<0.000000e+00> : vector<32xf32>
    %67 = vector.multi_reduction <add>, %66, %cst_30 [1] : vector<32x128xf32> to vector<32xf32>
    %68 = vector.shape_cast %67 : vector<32xf32> to vector<32x1xf32>
    %69 = vector.broadcast %68 : vector<32x1xf32> to vector<32x128xf32>
    %70 = arith.divf %66, %69 : vector<32x128xf32>
    %c0_31 = arith.constant 0 : index
    %c0_32 = arith.constant 0 : index
    %71 = vector.load %arg8[%c0_31, %c0_32] : memref<32x128xf32, #tpu.memory_space<vmem>>, vector<32x128xf32>
    tpu.vector_store %arg8[%c0_31, %c0_32], %70 {strides = array<i32>} : memref<32x128xf32, #tpu.memory_space<vmem>>, vector<32x128xf32>,
    return
  }
  func.func @transform_0(%arg0: i32) -> (i32, i32) {
    %c0_i32 = arith.constant 0 : i32
    %c0_i32_0 = arith.constant 0 : i32
    return %arg0, %c0_i32 : i32, i32
  }
  func.func @transform_1(%arg0: i32) -> (i32, i32) {
    %c0_i32 = arith.constant 0 : i32
    %c0_i32_0 = arith.constant 0 : i32
    %c0_i32_1 = arith.constant 0 : i32
    return %c0_i32, %c0_i32_0 : i32, i32
  }
  func.func @transform_2(%arg0: i32) -> (i32, i32) {
    %c0_i32 = arith.constant 0 : i32
    %c0_i32_0 = arith.constant 0 : i32
    %c0_i32_1 = arith.constant 0 : i32
    return %c0_i32, %c0_i32_0 : i32, i32
  }
  func.func @transform_3(%arg0: i32) -> (i32, i32) {
    %c0_i32 = arith.constant 0 : i32
    %c0_i32_0 = arith.constant 0 : i32
    %c0_i32_1 = arith.constant 0 : i32
    return %c0_i32, %c0_i32_0 : i32, i32
  }
  func.func @transform_4(%arg0: i32) -> (i32, i32) {
    %c0_i32 = arith.constant 0 : i32
    %c0_i32_0 = arith.constant 0 : i32
    %c0_i32_1 = arith.constant 0 : i32
    return %c0_i32, %c0_i32_0 : i32, i32
  }
  func.func @transform_5(%arg0: i32) -> (i32, i32) {
    %c0_i32 = arith.constant 0 : i32
    %c0_i32_0 = arith.constant 0 : i32
    %c0_i32_1 = arith.constant 0 : i32
    return %c0_i32, %c0_i32_0 : i32, i32
  }
  func.func @transform_6(%arg0: i32) -> (i32, i32) {
    %c0_i32 = arith.constant 0 : i32
    %c0_i32_0 = arith.constant 0 : i32
    %c0_i32_1 = arith.constant 0 : i32
    return %c0_i32, %c0_i32_0 : i32, i32
  }
  func.func @transform_7(%arg0: i32) -> (i32, i32) {
    %c0_i32 = arith.constant 0 : i32
    %c0_i32_0 = arith.constant 0 : i32
    return %arg0, %c0_i32 : i32, i32
  }
}

</mosaic_0001>

<llo_original>
// kernel: tpu_custom_call.1
$region0: #{tpu_custom_call.1}
  #allocation0 [shape = 'u32[]', space=smem, size = 0x4, offset = 0x4, fixed_abs, tag = 'smem constant byte address 0x4 - core index']
  #allocation1 [shape = 'u32[144,128]{1,0:T(1,128)}', space=vmem, size = 0x12000, scoped, tag = 'internal scratch']
  %s0 = inlined_call_operand.vmem [shape: f32[64,16], index: 0, kind: input, shape index: {}]
  %s1 = inlined_call_operand.vmem [shape: f32[16,256], index: 1, kind: input, shape index: {}]
  %s2 = inlined_call_operand.vmem [shape: f32[1,256], index: 2, kind: input, shape index: {}]
  %s3 = inlined_call_operand.hbm [shape: f32[256,256], index: 3, kind: input, shape index: {}]
  %s4 = inlined_call_operand.vmem [shape: f32[1,256], index: 4, kind: input, shape index: {}]
  %s5 = inlined_call_operand.hbm [shape: f32[256,128], index: 5, kind: input, shape index: {}]
  %s6 = inlined_call_operand.vmem [shape: f32[1,128], index: 6, kind: input, shape index: {}]
  %s7 = inlined_call_operand.hbm [shape: f32[64,128], index: 7, kind: output, shape index: {}]
  %s8 = sld [smem:[#allocation0]]
  $region69: #{tpu_custom_call.1} parent=0
    _
  %s10 = ssub.s32 1, %s8
  %s11 = scalar_select 0, %s10, %s8
  $region1: #{tpu_custom_call.1} parent=0
    #allocation2 [shape = 'u8[262144]{0}', space=vmem, size = 0x40000, scoped, tag = 'input window, operand 3, single buffered']
    #allocation3 [shape = 's32[2]{0}', space=sflag, size = 0x8, scoped, tag = 'scoped memory for tpu_custom_call.1']
    #allocation4 [shape = 's32[2]{0}', space=sflag, size = 0x8, scoped, tag = 'scoped memory for tpu_custom_call.1']
    #allocation5 [shape = 'u8[131072]{0}', space=vmem, size = 0x20000, scoped, tag = 'input window, operand 5, single buffered']
    #allocation6 [shape = 's32[1]{0}', space=sflag, size = 0x4, scoped, tag = 'scoped memory for tpu_custom_call.1']
    #allocation7 [shape = 'u8[32768]{0}', space=vmem, size = 0x8000, scoped, tag = 'output window, operand 0']
    %12 = vsyncpa [#allocation3], 0
    %13 = vsyncpa [#allocation6], 0
    %14 = vsyncpa [#allocation4], 0
    %s15 = scalar_lea.sflag [#allocation4], 1
    %16 = vsyncpa %s15, 0
    loop: start=0, step=1, limit=4
    $region2: #{tpu_custom_call.1} parent=1 // loop_pre_header
      _
    $region3: #{tpu_custom_call.1} parent=1 // loop_header
      %s18 = sphi 0, %s22
      %p19 = scmp.ge.s32.totalorder %s18, 4
      %s28 = sphi 0, %s30
      %s31 = sphi 0, %s28
      %s32 = sphi 0, %s31
      %s48 = sphi 0, %s32
      %s52 = sphi 0, %s52
      %s54 = sphi 0, %s52
      %s55 = sphi 0, %s54
      %s69 = sphi 0, %s55
      %s73 = sphi 0, %s73
      %s75 = sphi 0, %s73
      %s76 = sphi 0, %s75
      %s90 = sphi 0, %s76
      %s94 = sphi 0, %s94
      %s96 = sphi 0, %s94
      %s97 = sphi 0, %s96
      %s111 = sphi 0, %s97
      %s115 = sphi 0, %s115
      %s117 = sphi 0, %s115
      %s118 = sphi 0, %s117
      %s132 = sphi 0, %s118
      %s136 = sphi 0, %s136
      %s138 = sphi 0, %s136
      %s139 = sphi 0, %s138
      %s153 = sphi 0, %s139
      %s157 = sphi 0, %s157
      %s159 = sphi 0, %s157
      %s160 = sphi 0, %s159
      %s174 = sphi 0, %s160
      %s180 = sphi 0, %s182
      %s183 = sphi 0, %s180
      %s184 = sphi 0, %s183
      %s200 = sphi 0, %s184
    $region4: #{tpu_custom_call.1} parent=1 // loop_header_branch
      %21 = sbr.rel (%p19) target = $region8
    $region5: #{tpu_custom_call.1} parent=1 // loop_body
      %s23 = ssub.s32 %s18, 1
      %s24 = ssub.s32 %s18, 2
      %s25 = sadd.s32 %s18, 1
      %s26 = ssub.s32 %s18, %s25
      %p27 = scmp.eq.s32.totalorder %s26, 0
      %s29 = sadd.s32 %s28, 1
      %s30 = scalar_select %p27, %s28, %s29
      %p33 = pneg %p27
      %p34 = scmp.eq.s32.totalorder %s18, 1
      %p35 = por %p33, %p34
      %p36 = scmp.ne.s32.totalorder %s28, %s31
      %p37 = scmp.eq.s32.totalorder %s18, 0
      %p38 = por %p36, %p37
      %p39 = scmp.ne.s32.totalorder %s28, %s31
      %p40 = scmp.eq.s32.totalorder %s23, 1
      %p41 = por %p39, %p40
      %p42 = scmp.ne.s32.totalorder %s31, %s32
      %p43 = scmp.eq.s32.totalorder %s23, 0
      %p44 = por %p42, %p43
      %p45 = scmp.ne.s32.totalorder %s31, %s32
      %p46 = scmp.eq.s32.totalorder %s24, 1
      %p47 = por %p45, %p46
      %p49 = scmp.ne.s32.totalorder %s32, %s48
      %p50 = scmp.eq.s32.totalorder %s24, 0
      %p51 = por %p49, %p50
      %s53 = sadd.s32 %s52, 1
      %p56 = scmp.eq.s32.totalorder %s18, 1
      %p57 = scmp.ne.s32.totalorder %s52, %s54
      %p58 = scmp.eq.s32.totalorder %s18, 0
      %p59 = por %p57, %p58
      %p60 = scmp.ne.s32.totalorder %s52, %s54
      %p61 = scmp.eq.s32.totalorder %s23, 1
      %p62 = por %p60, %p61
      %p63 = scmp.ne.s32.totalorder %s54, %s55
      %p64 = scmp.eq.s32.totalorder %s23, 0
      %p65 = por %p63, %p64
      %p66 = scmp.ne.s32.totalorder %s54, %s55
      %p67 = scmp.eq.s32.totalorder %s24, 1
      %p68 = por %p66, %p67
      %p70 = scmp.ne.s32.totalorder %s55, %s69
      %p71 = scmp.eq.s32.totalorder %s24, 0
      %p72 = por %p70, %p71
      %s74 = sadd.s32 %s73, 1
      %p77 = scmp.eq.s32.totalorder %s18, 1
      %p78 = scmp.ne.s32.totalorder %s73, %s75
      %p79 = scmp.eq.s32.totalorder %s18, 0
      %p80 = por %p78, %p79
      %p81 = scmp.ne.s32.totalorder %s73, %s75
      %p82 = scmp.eq.s32.totalorder %s23, 1
      %p83 = por %p81, %p82
      %p84 = scmp.ne.s32.totalorder %s75, %s76
      %p85 = scmp.eq.s32.totalorder %s23, 0
      %p86 = por %p84, %p85
      %p87 = scmp.ne.s32.totalorder %s75, %s76
      %p88 = scmp.eq.s32.totalorder %s24, 1
      %p89 = por %p87, %p88
      %p91 = scmp.ne.s32.totalorder %s76, %s90
      %p92 = scmp.eq.s32.totalorder %s24, 0
      %p93 = por %p91, %p92
      %s95 = sadd.s32 %s94, 1
      %p98 = scmp.eq.s32.totalorder %s18, 1
      %p99 = scmp.ne.s32.totalorder %s94, %s96
      %p100 = scmp.eq.s32.totalorder %s18, 0
      %p101 = por %p99, %p100
      %p102 = scmp.ne.s32.totalorder %s94, %s96
      %p103 = scmp.eq.s32.totalorder %s23, 1
      %p104 = por %p102, %p103
      %p105 = scmp.ne.s32.totalorder %s96, %s97
      %p106 = scmp.eq.s32.totalorder %s23, 0
      %p107 = por %p105, %p106
      %p108 = scmp.ne.s32.totalorder %s96, %s97
      %p109 = scmp.eq.s32.totalorder %s24, 1
      %p110 = por %p108, %p109
      %p112 = scmp.ne.s32.totalorder %s97, %s111
      %p113 = scmp.eq.s32.totalorder %s24, 0
      %p114 = por %p112, %p113
      %s116 = sadd.s32 %s115, 1
      %p119 = scmp.eq.s32.totalorder %s18, 1
      %p120 = scmp.ne.s32.totalorder %s115, %s117
      %p121 = scmp.eq.s32.totalorder %s18, 0
      %p122 = por %p120, %p121
      %p123 = scmp.ne.s32.totalorder %s115, %s117
      %p124 = scmp.eq.s32.totalorder %s23, 1
      %p125 = por %p123, %p124
      %p126 = scmp.ne.s32.totalorder %s117, %s118
      %p127 = scmp.eq.s32.totalorder %s23, 0
      %p128 = por %p126, %p127
      %p129 = scmp.ne.s32.totalorder %s117, %s118
      %p130 = scmp.eq.s32.totalorder %s24, 1
      %p131 = por %p129, %p130
      %p133 = scmp.ne.s32.totalorder %s118, %s132
      %p134 = scmp.eq.s32.totalorder %s24, 0
      %p135 = por %p133, %p134
      %s137 = sadd.s32 %s136, 1
      %p140 = scmp.eq.s32.totalorder %s18, 1
      %p141 = scmp.ne.s32.totalorder %s136, %s138
      %p142 = scmp.eq.s32.totalorder %s18, 0
      %p143 = por %p141, %p142
      %p144 = scmp.ne.s32.totalorder %s136, %s138
      %p145 = scmp.eq.s32.totalorder %s23, 1
      %p146 = por %p144, %p145
      %p147 = scmp.ne.s32.totalorder %s138, %s139
      %p148 = scmp.eq.s32.totalorder %s23, 0
      %p149 = por %p147, %p148
      %p150 = scmp.ne.s32.totalorder %s138, %s139
      %p151 = scmp.eq.s32.totalorder %s24, 1
      %p152 = por %p150, %p151
      %p154 = scmp.ne.s32.totalorder %s139, %s153
      %p155 = scmp.eq.s32.totalorder %s24, 0
      %p156 = por %p154, %p155
      %s158 = sadd.s32 %s157, 1
      %p161 = scmp.eq.s32.totalorder %s18, 1
      %p162 = scmp.ne.s32.totalorder %s157, %s159
      %p163 = scmp.eq.s32.totalorder %s18, 0
      %p164 = por %p162, %p163
      %p165 = scmp.ne.s32.totalorder %s157, %s159
      %p166 = scmp.eq.s32.totalorder %s23, 1
      %p167 = por %p165, %p166
      %p168 = scmp.ne.s32.totalorder %s159, %s160
      %p169 = scmp.eq.s32.totalorder %s23, 0
      %p170 = por %p168, %p169
      %p171 = scmp.ne.s32.totalorder %s159, %s160
      %p172 = scmp.eq.s32.totalorder %s24, 1
      %p173 = por %p171, %p172
      %p175 = scmp.ne.s32.totalorder %s160, %s174
      %p176 = scmp.eq.s32.totalorder %s24, 0
      %p177 = por %p175, %p176
      %s178 = ssub.s32 %s18, %s25
      %p179 = scmp.eq.s32.totalorder %s178, 0
      %s181 = sadd.s32 %s180, 1
      %s182 = scalar_select %p179, %s180, %s181
      %p185 = pneg %p179
      %p186 = scmp.eq.s32.totalorder %s18, 1
      %p187 = por %p185, %p186
      %p188 = scmp.ne.s32.totalorder %s180, %s183
      %p189 = scmp.eq.s32.totalorder %s18, 0
      %p190 = por %p188, %p189
      %p191 = scmp.ne.s32.totalorder %s180, %s183
      %p192 = scmp.eq.s32.totalorder %s23, 1
      %p193 = por %p191, %p192
      %p194 = scmp.ne.s32.totalorder %s183, %s184
      %p195 = scmp.eq.s32.totalorder %s23, 0
      %p196 = por %p194, %p195
      %p197 = scmp.ne.s32.totalorder %s183, %s184
      %p198 = scmp.eq.s32.totalorder %s24, 1
      %p199 = por %p197, %p198
      %p201 = scmp.ne.s32.totalorder %s184, %s200
      %p202 = scmp.eq.s32.totalorder %s24, 0
      %p203 = por %p201, %p202
      %p204 = scmp.le.s32.totalorder 1, %s18
      %p205 = scmp.lt.s32.totalorder %s18, 3
      %p206 = pnand %p204, %p205
      %p207 = pneg %p206
      // Predicated region
      $region9: #{tpu_custom_call.1} parent=5 // pred_check
        _
      $region10: #{tpu_custom_call.1} parent=5 // pred_check_branch
        %209 = sbr.rel (%p206) target = $region12
      $region11: #{tpu_custom_call.1} parent=5 // pred_region
        %s210 = ssub.s32 %s18, 1
        // Predicated region
        $region13: #{tpu_custom_call.1} parent=11 // pred_check
          %p211 = pneg %p65
        $region14: #{tpu_custom_call.1} parent=11 // pred_check_branch
          %213 = sbr.rel (%p211) target = $region16
        $region15: #{tpu_custom_call.1} parent=11 // pred_region
          _
        $region16: #{tpu_custom_call.1} parent=11 // pred_fallthru
          _
        // Predicated region
        $region17: #{tpu_custom_call.1} parent=11 // pred_check
          %p214 = pneg %p86
        $region18: #{tpu_custom_call.1} parent=11 // pred_check_branch
          %216 = sbr.rel (%p214) target = $region20
        $region19: #{tpu_custom_call.1} parent=11 // pred_region
          _
        $region20: #{tpu_custom_call.1} parent=11 // pred_fallthru
          _
        // Predicated region
        $region21: #{tpu_custom_call.1} parent=11 // pred_check
          %p217 = pneg %p107
        $region22: #{tpu_custom_call.1} parent=11 // pred_check_branch
          %219 = sbr.rel (%p217) target = $region24
        $region23: #{tpu_custom_call.1} parent=11 // pred_region
          %s221 = ssub.s32 8192, 8192
          %222 = vsyncadd [#allocation3], %s221
          %s223 = sshll.u32 [#allocation2], 4
          %s224 = int_to_ptr.vmem [resolvable:$true] %s223
          %229 = dma.hbm_to_vmem [thread:$0]  %s3, 8192, %s224, [#allocation3], 256, 256, 16
        $region24: #{tpu_custom_call.1} parent=11 // pred_fallthru
          _
        // Predicated region
        $region25: #{tpu_custom_call.1} parent=11 // pred_check
          %p230 = pneg %p128
        $region26: #{tpu_custom_call.1} parent=11 // pred_check_branch
          %232 = sbr.rel (%p230) target = $region28
        $region27: #{tpu_custom_call.1} parent=11 // pred_region
          _
        $region28: #{tpu_custom_call.1} parent=11 // pred_fallthru
          _
        // Predicated region
        $region29: #{tpu_custom_call.1} parent=11 // pred_check
          %p233 = pneg %p149
        $region30: #{tpu_custom_call.1} parent=11 // pred_check_branch
          %235 = sbr.rel (%p233) target = $region32
        $region31: #{tpu_custom_call.1} parent=11 // pred_region
          %s237 = ssub.s32 4096, 4096
          %238 = vsyncadd [#allocation6], %s237
          %s239 = sshll.u32 [#allocation5], 4
          %s240 = int_to_ptr.vmem [resolvable:$true] %s239
          %245 = dma.hbm_to_vmem [thread:$0]  %s5, 4096, %s240, [#allocation6], 128, 128, 8
        $region32: #{tpu_custom_call.1} parent=11 // pred_fallthru
          _
        // Predicated region
        $region33: #{tpu_custom_call.1} parent=11 // pred_check
          %p246 = pneg %p170
        $region34: #{tpu_custom_call.1} parent=11 // pred_check_branch
          %248 = sbr.rel (%p246) target = $region36
        $region35: #{tpu_custom_call.1} parent=11 // pred_region
          _
        $region36: #{tpu_custom_call.1} parent=11 // pred_fallthru
          _
      $region12: #{tpu_custom_call.1} parent=5 // pred_fallthru
        _
      %p249 = scmp.lt.s32.totalorder %s18, 2
      // Predicated region
      $region37: #{tpu_custom_call.1} parent=5 // pred_check
        %p250 = pneg %p249
      $region38: #{tpu_custom_call.1} parent=5 // pred_check_branch
        %252 = sbr.rel (%p250) target = $region40
      $region39: #{tpu_custom_call.1} parent=5 // pred_region
        // Predicated region
        $region41: #{tpu_custom_call.1} parent=39 // pred_check
          %p253 = pneg %p38
        $region42: #{tpu_custom_call.1} parent=39 // pred_check_branch
          %255 = sbr.rel (%p253) target = $region44
        $region43: #{tpu_custom_call.1} parent=39 // pred_region
          %s256 = smul.u32 4, %s18
          %p257 = scmp.lt.s32.totalorder %s256, 7
          %s258 = scalar_select %p257, %s256, 7
          %s259 = smul.addr %s258, 8
          %s260 = scalar_lea.vmem %s0, %s259
          %s261 = smul.u32 4, %s18
        $region44: #{tpu_custom_call.1} parent=39 // pred_fallthru
          _
      $region40: #{tpu_custom_call.1} parent=5 // pred_fallthru
        _
      %p262 = scmp.le.s32.totalorder 1, %s18
      %p263 = scmp.lt.s32.totalorder %s18, 3
      %p264 = pnand %p262, %p263
      %p265 = pneg %p264
      // Predicated region
      $region45: #{tpu_custom_call.1} parent=5 // pred_check
        _
      $region46: #{tpu_custom_call.1} parent=5 // pred_check_branch
        %267 = sbr.rel (%p264) target = $region48
      $region47: #{tpu_custom_call.1} parent=5 // pred_region
        %s268 = ssub.s32 %s18, 1
        // Predicated region
        $region49: #{tpu_custom_call.1} parent=47 // pred_check
          %p269 = pneg %p107
        $region50: #{tpu_custom_call.1} parent=47 // pred_check_branch
          %271 = sbr.rel (%p269) target = $region52
        $region51: #{tpu_custom_call.1} parent=47 // pred_region
          %272 = dma.done [#allocation3], 8192
        $region52: #{tpu_custom_call.1} parent=47 // pred_fallthru
          _
        // Predicated region
        $region53: #{tpu_custom_call.1} parent=47 // pred_check
          %p273 = pneg %p149
        $region54: #{tpu_custom_call.1} parent=47 // pred_check_branch
          %275 = sbr.rel (%p273) target = $region56
        $region55: #{tpu_custom_call.1} parent=47 // pred_region
          %276 = dma.done [#allocation6], 4096
        $region56: #{tpu_custom_call.1} parent=47 // pred_fallthru
          _
        %s277 = smul.u32 4, %s23
        %p278 = scmp.lt.s32.totalorder %s277, 7
        %s279 = scalar_select %p278, %s277, 7
        %s280 = smul.addr %s279, 8
        %s281 = scalar_lea.vmem %s0, %s280
        %p282 = pneg %p44
        %p283 = pneg %p41
        %p284 = pneg %p65
        %p285 = pneg %p62
        %p286 = pneg %p86
        %p287 = pneg %p83
        %p288 = pneg %p107
        %p289 = pneg %p104
        %p290 = pneg %p128
        %p291 = pneg %p125
        %p292 = pneg %p149
        %p293 = pneg %p146
        %p294 = pneg %p170
        %p295 = pneg %p167
        %p296 = pneg %p196
        %p297 = pneg %p193
        %s298 = sand.u32 %s183, 1
        %s299 = scalar_lea.sflag [#allocation4], %s298
        %s300 = sand.u32 %s183, 1
        %s301 = smul.addr %s300, 32
        %s302 = scalar_lea.vmem [#allocation7], %s301
        %s303 = smul.u32 4, %s23
        %p304 = scmp.lt.s32.totalorder %s303, 7
        %s305 = scalar_select %p304, %s303, 7
        %s306 = smul.addr %s305, 8
        %s307 = scalar_lea.vmem %s0, %s306
        %s308 = smul.u32 4, %s23
        %s309 = smul.u32 4, %s23
        %v310 = vld [vmem:[%s307] sm:$0xff]
        %v311 = vld [vmem:[%s307 + $0x8] sm:$0xff]
        %v312 = vld [vmem:[%s307 + $0x10] sm:$0xff]
        %v313 = vld [vmem:[%s307 + $0x18] sm:$0xff]
        %v314 = vld [vmem:[%s1] sm:$0xff]
        %v315 = vld [vmem:[%s1 + $0x8] sm:$0xff]
        %v316 = vld [vmem:[%s1 + $0x10] sm:$0xff]
        %v317 = vld [vmem:[%s1 + $0x18] sm:$0xff]
        %v318 = vld [vmem:[%s2] sm:$0x3]
        %v320 = vlaneseq
        %v321 = vshrl.u32 %v320, 7
        %v322 = vsub.s32 0, %v321
        %v323 = vrot.slane %v318, %v322
        %v324 = vlaneseq
        %v325 = vshrl.u32 %v324, 7
        %v326 = vsub.s32 1, %v325
        %v327 = vrot.slane %v318, %v326
        %vm330 = vcmask 130048
        %v332 = vsel %vm330, %v310, 0
        %v335 = vsel %vm330, %v311, 0
        %v338 = vsel %vm330, %v312, 0
        %v341 = vsel %vm330, %v313, 0
        %343 = vmatprep.subr.mxu0 %v315
        %344 = vmatpush1.msra.mxu0 %v314
        %345 = vmatprep.subr.mxu0 %v317
        %346 = vmatpush1.msra.mxu0 %v316
        %347 = vmatprep.subr.mxu0 0.0
        %348 = vmatpush1.msra.mxu0 0.0
        %349 = vmatprep.subr.mxu0 0.0
        %350 = vmatpush1.msra.mxu0 0.0
        %351 = vmatprep.subr.mxu0 0.0
        %352 = vmatpush1.msra.mxu0 0.0
        %353 = vmatprep.subr.mxu0 0.0
        %354 = vmatpush1.msra.mxu0 0.0
        %355 = vmatprep.subr.mxu0 0.0
        %356 = vmatpush1.msra.mxu0 0.0
        %357 = vmatprep.subr.mxu0 0.0
        %358 = vmatpush1.msra.mxu0 0.0
        %359 = vmatprep.subr.mxu0 0.0
        %360 = vmatpush1.msra.mxu0 0.0
        %361 = vmatprep.subr.mxu0 0.0
        %362 = vmatpush1.msra.mxu0 0.0
        %363 = vmatprep.subr.mxu0 0.0
        %364 = vmatpush1.msra.mxu0 0.0
        %365 = vmatprep.subr.mxu0 0.0
        %366 = vmatpush1.msra.mxu0 0.0
        %367 = vmatprep.subr.mxu0 0.0
        %368 = vmatpush1.msra.mxu0 0.0
        %369 = vmatprep.subr.mxu0 0.0
        %370 = vmatpush1.msra.mxu0 0.0
        %371 = vmatprep.subr.mxu0 0.0
        %372 = vmatpush1.msra.mxu0 0.0
        %373 = vmatprep.subr.mxu0 0.0
        %374 = vmatpush1.msra.mxu0 0.0
        %375 = vmatprep.subr.mxu0 0.0
        %376 = vmatpush1.msra.mxu0 0.0
        %377 = vmatprep.subr.mxu0 0.0
        %378 = vmatpush1.msra.mxu0 0.0
        %379 = vmatprep.subr.mxu0 0.0
        %380 = vmatpush1.msra.mxu0 0.0
        %381 = vmatprep.subr.mxu0 0.0
        %382 = vmatpush1.msra.mxu0 0.0
        %383 = vmatprep.subr.mxu0 0.0
        %384 = vmatpush1.msra.mxu0 0.0
        %385 = vmatprep.subr.mxu0 0.0
        %386 = vmatpush1.msra.mxu0 0.0
        %387 = vmatprep.subr.mxu0 0.0
        %388 = vmatpush1.msra.mxu0 0.0
        %389 = vmatprep.subr.mxu0 0.0
        %390 = vmatpush1.msra.mxu0 0.0
        %391 = vmatprep.subr.mxu0 0.0
        %392 = vmatpush1.msra.mxu0 0.0
        %393 = vmatprep.subr.mxu0 0.0
        %394 = vmatpush1.msra.mxu0 0.0
        %395 = vmatprep.subr.mxu0 0.0
        %396 = vmatpush1.msra.mxu0 0.0
        %397 = vmatprep.subr.mxu0 0.0
        %398 = vmatpush1.msra.mxu0 0.0
        %399 = vmatprep.subr.mxu0 0.0
        %400 = vmatpush1.msra.mxu0 0.0
        %401 = vmatprep.subr.mxu0 0.0
        %402 = vmatpush1.msra.mxu0 0.0
        %403 = vmatprep.subr.mxu0 0.0
        %404 = vmatpush1.msra.mxu0 0.0
        %405 = vmatprep.subr.mxu0 0.0
        %406 = vmatpush1.msra.mxu0 0.0
        %407 = vmatprep.mubr.f32.mxu0 0.0
        %408 = vmatmul.mubr.f32.gmra.mrb[0].mxu0 %v332
        %v409 = vpop.f32.mrb[0].mxu0
        %v410 = vadd.f32 %v323, %v409
        %v411 = vpop.f32.mrb[0].mxu0
        %v412 = vadd.f32 %v327, %v411
        %413 = vmatprep.mubr.f32.mxu0 0.0
        %414 = vmatmul.mubr.f32.gmra.mrb[0].mxu0 %v335
        %v415 = vpop.f32.mrb[0].mxu0
        %v416 = vadd.f32 %v323, %v415
        %v417 = vpop.f32.mrb[0].mxu0
        %v418 = vadd.f32 %v327, %v417
        %419 = vmatprep.mubr.f32.mxu0 0.0
        %420 = vmatmul.mubr.f32.gmra.mrb[0].mxu0 %v338
        %v421 = vpop.f32.mrb[0].mxu0
        %v422 = vadd.f32 %v323, %v421
        %v423 = vpop.f32.mrb[0].mxu0
        %v424 = vadd.f32 %v327, %v423
        %425 = vmatprep.mubr.f32.mxu0 0.0
        %426 = vmatmul.mubr.f32.gmra.mrb[0].mxu0 %v341
        %v427 = vpop.f32.mrb[0].mxu0
        %v428 = vadd.f32 %v323, %v427
        %v429 = vpop.f32.mrb[0].mxu0
        %v430 = vadd.f32 %v327, %v429
        %431 = vdwg.mxu0
        %v432 = vmul.f32 %v410, 0.01
        %v433 = vmul.f32 %v412, 0.01
        %v434 = vmul.f32 %v416, 0.01
        %v435 = vmul.f32 %v418, 0.01
        %v436 = vmul.f32 %v422, 0.01
        %v437 = vmul.f32 %v424, 0.01
        %v438 = vmul.f32 %v428, 0.01
        %v439 = vmul.f32 %v430, 0.01
        %v440 = vmax.f32 %v410, %v432
        %v441 = vmax.f32 %v412, %v433
        %v442 = vmax.f32 %v416, %v434
        %v443 = vmax.f32 %v418, %v435
        %v444 = vmax.f32 %v422, %v436
        %v445 = vmax.f32 %v424, %v437
        %v446 = vmax.f32 %v428, %v438
        %v447 = vmax.f32 %v430, %v439
        %v448 = vadd.f32 %v440, %v441
        %449 = vadd.xlane.f32.xlu0 %v448
        %v450 = vpop.xlane.xlu0 %449
        %v451 = vadd.f32 %v442, %v443
        %452 = vadd.xlane.f32.xlu0 %v451
        %v453 = vpop.xlane.xlu0 %452
        %v454 = vadd.f32 %v444, %v445
        %455 = vadd.xlane.f32.xlu0 %v454
        %v456 = vpop.xlane.xlu0 %455
        %v457 = vadd.f32 %v446, %v447
        %458 = vadd.xlane.f32.xlu0 %v457
        %v459 = vpop.xlane.xlu0 %458
        %v460 = vrcp.pop 256.0
        %v461 = vmul.f32 %v450, %v460
        %v462 = vmul.f32 %v453, %v460
        %v463 = vmul.f32 %v456, %v460
        %v464 = vmul.f32 %v459, %v460
        %v465 = vmul.f32 %v440, %v440
        %v466 = vmul.f32 %v441, %v441
        %v467 = vmul.f32 %v442, %v442
        %v468 = vmul.f32 %v443, %v443
        %v469 = vmul.f32 %v444, %v444
        %v470 = vmul.f32 %v445, %v445
        %v471 = vmul.f32 %v446, %v446
        %v472 = vmul.f32 %v447, %v447
        %v473 = vadd.f32 %v465, %v466
        %474 = vadd.xlane.f32.xlu0 %v473
        %v475 = vpop.xlane.xlu0 %474
        %v476 = vadd.f32 %v467, %v468
        %477 = vadd.xlane.f32.xlu0 %v476
        %v478 = vpop.xlane.xlu0 %477
        %v479 = vadd.f32 %v469, %v470
        %480 = vadd.xlane.f32.xlu0 %v479
        %v481 = vpop.xlane.xlu0 %480
        %v482 = vadd.f32 %v471, %v472
        %483 = vadd.xlane.f32.xlu0 %v482
        %v484 = vpop.xlane.xlu0 %483
        %v485 = vmul.f32 %v475, %v460
        %v486 = vmul.f32 %v478, %v460
        %v487 = vmul.f32 %v481, %v460
        %v488 = vmul.f32 %v484, %v460
        %v489 = vmul.f32 %v461, %v461
        %v490 = vmul.f32 %v462, %v462
        %v491 = vmul.f32 %v463, %v463
        %v492 = vmul.f32 %v464, %v464
        %v493 = vsub.f32 %v485, %v489
        %v494 = vsub.f32 %v486, %v490
        %v495 = vsub.f32 %v487, %v491
        %v496 = vsub.f32 %v488, %v492
        %v497 = vmax.f32 %v493, 0.0
        %v498 = vmax.f32 %v494, 0.0
        %v499 = vmax.f32 %v495, 0.0
        %v500 = vmax.f32 %v496, 0.0
        %v501 = vsub.f32 %v440, %v461
        %v502 = vsub.f32 %v441, %v461
        %v503 = vsub.f32 %v442, %v462
        %v504 = vsub.f32 %v443, %v462
        %v505 = vsub.f32 %v444, %v463
        %v506 = vsub.f32 %v445, %v463
        %v507 = vsub.f32 %v446, %v464
        %v508 = vsub.f32 %v447, %v464
        %v509 = vadd.f32 %v497, 1e-05
        %v510 = vadd.f32 %v498, 1e-05
        %v511 = vadd.f32 %v499, 1e-05
        %v512 = vadd.f32 %v500, 1e-05
        %v513 = vrsqrt.pop %v509
        %v514 = vrsqrt.pop %v510
        %v515 = vrsqrt.pop %v511
        %v516 = vrsqrt.pop %v512
        %v517 = vmul.f32 %v501, %v513
        %v518 = vmul.f32 %v502, %v513
        %v519 = vmul.f32 %v503, %v514
        %v520 = vmul.f32 %v504, %v514
        %v521 = vmul.f32 %v505, %v515
        %v522 = vmul.f32 %v506, %v515
        %v523 = vmul.f32 %v507, %v516
        %v524 = vmul.f32 %v508, %v516
        %v525 = vld [vmem:[#allocation2] sm:$0xff]
        %v526 = vld [vmem:[#allocation2 + $0x8] sm:$0xff]
        %v527 = vld [vmem:[#allocation2 + $0x10] sm:$0xff]
        %v528 = vld [vmem:[#allocation2 + $0x18] sm:$0xff]
        %v529 = vld [vmem:[#allocation2 + $0x20] sm:$0xff]
        %v530 = vld [vmem:[#allocation2 + $0x28] sm:$0xff]
        %v531 = vld [vmem:[#allocation2 + $0x30] sm:$0xff]
        %v532 = vld [vmem:[#allocation2 + $0x38] sm:$0xff]
        %v533 = vld [vmem:[#allocation2 + $0x40] sm:$0xff]
        %v534 = vld [vmem:[#allocation2 + $0x48] sm:$0xff]
        %v535 = vld [vmem:[#allocation2 + $0x50] sm:$0xff]
        %v536 = vld [vmem:[#allocation2 + $0x58] sm:$0xff]
        %v537 = vld [vmem:[#allocation2 + $0x60] sm:$0xff]
        %v538 = vld [vmem:[#allocation2 + $0x68] sm:$0xff]
        %v539 = vld [vmem:[#allocation2 + $0x70] sm:$0xff]
        %v540 = vld [vmem:[#allocation2 + $0x78] sm:$0xff]
        %v541 = vld [vmem:[#allocation2 + $0x80] sm:$0xff]
        %v542 = vld [vmem:[#allocation2 + $0x88] sm:$0xff]
        %v543 = vld [vmem:[#allocation2 + $0x90] sm:$0xff]
        %v544 = vld [vmem:[#allocation2 + $0x98] sm:$0xff]
        %v545 = vld [vmem:[#allocation2 + $0xa0] sm:$0xff]
        %v546 = vld [vmem:[#allocation2 + $0xa8] sm:$0xff]
        %v547 = vld [vmem:[#allocation2 + $0xb0] sm:$0xff]
        %v548 = vld [vmem:[#allocation2 + $0xb8] sm:$0xff]
        %v549 = vld [vmem:[#allocation2 + $0xc0] sm:$0xff]
        %v550 = vld [vmem:[#allocation2 + $0xc8] sm:$0xff]
        %v551 = vld [vmem:[#allocation2 + $0xd0] sm:$0xff]
        %v552 = vld [vmem:[#allocation2 + $0xd8] sm:$0xff]
        %v553 = vld [vmem:[#allocation2 + $0xe0] sm:$0xff]
        %v554 = vld [vmem:[#allocation2 + $0xe8] sm:$0xff]
        %v555 = vld [vmem:[#allocation2 + $0xf0] sm:$0xff]
        %v556 = vld [vmem:[#allocation2 + $0xf8] sm:$0xff]
        %v557 = vld [vmem:[#allocation2 + $0x100] sm:$0xff]
        %v558 = vld [vmem:[#allocation2 + $0x108] sm:$0xff]
        %v559 = vld [vmem:[#allocation2 + $0x110] sm:$0xff]
        %v560 = vld [vmem:[#allocation2 + $0x118] sm:$0xff]
        %v561 = vld [vmem:[#allocation2 + $0x120] sm:$0xff]
        %v562 = vld [vmem:[#allocation2 + $0x128] sm:$0xff]
        %v563 = vld [vmem:[#allocation2 + $0x130] sm:$0xff]
        %v564 = vld [vmem:[#allocation2 + $0x138] sm:$0xff]
        %v565 = vld [vmem:[#allocation2 + $0x140] sm:$0xff]
        %v566 = vld [vmem:[#allocation2 + $0x148] sm:$0xff]
        %v567 = vld [vmem:[#allocation2 + $0x150] sm:$0xff]
        %v568 = vld [vmem:[#allocation2 + $0x158] sm:$0xff]
        %v569 = vld [vmem:[#allocation2 + $0x160] sm:$0xff]
        %v570 = vld [vmem:[#allocation2 + $0x168] sm:$0xff]
        %v571 = vld [vmem:[#allocation2 + $0x170] sm:$0xff]
        %v572 = vld [vmem:[#allocation2 + $0x178] sm:$0xff]
        %v573 = vld [vmem:[#allocation2 + $0x180] sm:$0xff]
        %v574 = vld [vmem:[#allocation2 + $0x188] sm:$0xff]
        %v575 = vld [vmem:[#allocation2 + $0x190] sm:$0xff]
        %v576 = vld [vmem:[#allocation2 + $0x198] sm:$0xff]
        %v577 = vld [vmem:[#allocation2 + $0x1a0] sm:$0xff]
        %v578 = vld [vmem:[#allocation2 + $0x1a8] sm:$0xff]
        %v579 = vld [vmem:[#allocation2 + $0x1b0] sm:$0xff]
        %v580 = vld [vmem:[#allocation2 + $0x1b8] sm:$0xff]
        %v581 = vld [vmem:[#allocation2 + $0x1c0] sm:$0xff]
        %v582 = vld [vmem:[#allocation2 + $0x1c8] sm:$0xff]
        %v583 = vld [vmem:[#allocation2 + $0x1d0] sm:$0xff]
        %v584 = vld [vmem:[#allocation2 + $0x1d8] sm:$0xff]
        %v585 = vld [vmem:[#allocation2 + $0x1e0] sm:$0xff]
        %v586 = vld [vmem:[#allocation2 + $0x1e8] sm:$0xff]
        %v587 = vld [vmem:[#allocation2 + $0x1f0] sm:$0xff]
        %v588 = vld [vmem:[#allocation2 + $0x1f8] sm:$0xff]
        %v589 = vld [vmem:[%s4] sm:$0x3]
        %v591 = vlaneseq
        %v592 = vshrl.u32 %v591, 7
        %v593 = vsub.s32 0, %v592
        %v594 = vrot.slane %v589, %v593
        %v595 = vlaneseq
        %v596 = vshrl.u32 %v595, 7
        %v597 = vsub.s32 1, %v596
        %v598 = vrot.slane %v589, %v597
        %601 = vmatprep.subr.mxu0 %v526
        %602 = vmatpush1.msra.mxu0 %v525
        %603 = vmatprep.subr.mxu0 %v528
        %604 = vmatpush1.msra.mxu0 %v527
        %605 = vmatprep.subr.mxu0 %v530
        %606 = vmatpush1.msra.mxu0 %v529
        %607 = vmatprep.subr.mxu0 %v532
        %608 = vmatpush1.msra.mxu0 %v531
        %609 = vmatprep.subr.mxu0 %v534
        %610 = vmatpush1.msra.mxu0 %v533
        %611 = vmatprep.subr.mxu0 %v536
        %612 = vmatpush1.msra.mxu0 %v535
        %613 = vmatprep.subr.mxu0 %v538
        %614 = vmatpush1.msra.mxu0 %v537
        %615 = vmatprep.subr.mxu0 %v540
        %616 = vmatpush1.msra.mxu0 %v539
        %617 = vmatprep.subr.mxu0 %v542
        %618 = vmatpush1.msra.mxu0 %v541
        %619 = vmatprep.subr.mxu0 %v544
        %620 = vmatpush1.msra.mxu0 %v543
        %621 = vmatprep.subr.mxu0 %v546
        %622 = vmatpush1.msra.mxu0 %v545
        %623 = vmatprep.subr.mxu0 %v548
        %624 = vmatpush1.msra.mxu0 %v547
        %625 = vmatprep.subr.mxu0 %v550
        %626 = vmatpush1.msra.mxu0 %v549
        %627 = vmatprep.subr.mxu0 %v552
        %628 = vmatpush1.msra.mxu0 %v551
        %629 = vmatprep.subr.mxu0 %v554
        %630 = vmatpush1.msra.mxu0 %v553
        %631 = vmatprep.subr.mxu0 %v556
        %632 = vmatpush1.msra.mxu0 %v555
        %633 = vmatprep.subr.mxu0 %v558
        %634 = vmatpush1.msra.mxu0 %v557
        %635 = vmatprep.subr.mxu0 %v560
        %636 = vmatpush1.msra.mxu0 %v559
        %637 = vmatprep.subr.mxu0 %v562
        %638 = vmatpush1.msra.mxu0 %v561
        %639 = vmatprep.subr.mxu0 %v564
        %640 = vmatpush1.msra.mxu0 %v563
        %641 = vmatprep.subr.mxu0 %v566
        %642 = vmatpush1.msra.mxu0 %v565
        %643 = vmatprep.subr.mxu0 %v568
        %644 = vmatpush1.msra.mxu0 %v567
        %645 = vmatprep.subr.mxu0 %v570
        %646 = vmatpush1.msra.mxu0 %v569
        %647 = vmatprep.subr.mxu0 %v572
        %648 = vmatpush1.msra.mxu0 %v571
        %649 = vmatprep.subr.mxu0 %v574
        %650 = vmatpush1.msra.mxu0 %v573
        %651 = vmatprep.subr.mxu0 %v576
        %652 = vmatpush1.msra.mxu0 %v575
        %653 = vmatprep.subr.mxu0 %v578
        %654 = vmatpush1.msra.mxu0 %v577
        %655 = vmatprep.subr.mxu0 %v580
        %656 = vmatpush1.msra.mxu0 %v579
        %657 = vmatprep.subr.mxu0 %v582
        %658 = vmatpush1.msra.mxu0 %v581
        %659 = vmatprep.subr.mxu0 %v584
        %660 = vmatpush1.msra.mxu0 %v583
        %661 = vmatprep.subr.mxu0 %v586
        %662 = vmatpush1.msra.mxu0 %v585
        %663 = vmatprep.subr.mxu0 %v588
        %664 = vmatpush1.msra.mxu0 %v587
        %665 = vmatprep.mubr.f32.mxu0 %v518
        %666 = vmatmul.mubr.f32.gmra.mrb[0].mxu0 %v517
        %v667 = vpop.f32.mrb[0].mxu0
        %v668 = vadd.f32 %v594, %v667
        %v669 = vpop.f32.mrb[0].mxu0
        %v670 = vadd.f32 %v598, %v669
        %671 = vmatprep.mubr.f32.mxu0 %v520
        %672 = vmatmul.mubr.f32.gmra.mrb[0].mxu0 %v519
        %v673 = vpop.f32.mrb[0].mxu0
        %v674 = vadd.f32 %v594, %v673
        %v675 = vpop.f32.mrb[0].mxu0
        %v676 = vadd.f32 %v598, %v675
        %677 = vmatprep.mubr.f32.mxu0 %v522
        %678 = vmatmul.mubr.f32.gmra.mrb[0].mxu0 %v521
        %v679 = vpop.f32.mrb[0].mxu0
        %v680 = vadd.f32 %v594, %v679
        %v681 = vpop.f32.mrb[0].mxu0
        %v682 = vadd.f32 %v598, %v681
        %683 = vmatprep.mubr.f32.mxu0 %v524
        %684 = vmatmul.mubr.f32.gmra.mrb[0].mxu0 %v523
        %v685 = vpop.f32.mrb[0].mxu0
        %v686 = vadd.f32 %v594, %v685
        %v687 = vpop.f32.mrb[0].mxu0
        %v688 = vadd.f32 %v598, %v687
        %689 = vdwg.mxu0
        %v690 = vmul.f32 %v668, 0.01
        %v691 = vmul.f32 %v670, 0.01
        %v692 = vmul.f32 %v674, 0.01
        %v693 = vmul.f32 %v676, 0.01
        %v694 = vmul.f32 %v680, 0.01
        %v695 = vmul.f32 %v682, 0.01
        %v696 = vmul.f32 %v686, 0.01
        %v697 = vmul.f32 %v688, 0.01
        %v698 = vmax.f32 %v668, %v690
        %v699 = vmax.f32 %v670, %v691
        %v700 = vmax.f32 %v674, %v692
        %v701 = vmax.f32 %v676, %v693
        %v702 = vmax.f32 %v680, %v694
        %v703 = vmax.f32 %v682, %v695
        %v704 = vmax.f32 %v686, %v696
        %v705 = vmax.f32 %v688, %v697
        %v706 = vadd.f32 %v698, %v699
        %707 = vadd.xlane.f32.xlu0 %v706
        %v708 = vpop.xlane.xlu0 %707
        %v709 = vadd.f32 %v700, %v701
        %710 = vadd.xlane.f32.xlu0 %v709
        %v711 = vpop.xlane.xlu0 %710
        %v712 = vadd.f32 %v702, %v703
        %713 = vadd.xlane.f32.xlu0 %v712
        %v714 = vpop.xlane.xlu0 %713
        %v715 = vadd.f32 %v704, %v705
        %716 = vadd.xlane.f32.xlu0 %v715
        %v717 = vpop.xlane.xlu0 %716
        %v718 = vmul.f32 %v708, %v460
        %v719 = vmul.f32 %v711, %v460
        %v720 = vmul.f32 %v714, %v460
        %v721 = vmul.f32 %v717, %v460
        %v722 = vmul.f32 %v698, %v698
        %v723 = vmul.f32 %v699, %v699
        %v724 = vmul.f32 %v700, %v700
        %v725 = vmul.f32 %v701, %v701
        %v726 = vmul.f32 %v702, %v702
        %v727 = vmul.f32 %v703, %v703
        %v728 = vmul.f32 %v704, %v704
        %v729 = vmul.f32 %v705, %v705
        %v730 = vadd.f32 %v722, %v723
        %731 = vadd.xlane.f32.xlu0 %v730
        %v732 = vpop.xlane.xlu0 %731
        %v733 = vadd.f32 %v724, %v725
        %734 = vadd.xlane.f32.xlu0 %v733
        %v735 = vpop.xlane.xlu0 %734
        %v736 = vadd.f32 %v726, %v727
        %737 = vadd.xlane.f32.xlu0 %v736
        %v738 = vpop.xlane.xlu0 %737
        %v739 = vadd.f32 %v728, %v729
        %740 = vadd.xlane.f32.xlu0 %v739
        %v741 = vpop.xlane.xlu0 %740
        %v742 = vmul.f32 %v732, %v460
        %v743 = vmul.f32 %v735, %v460
        %v744 = vmul.f32 %v738, %v460
        %v745 = vmul.f32 %v741, %v460
        %v746 = vmul.f32 %v718, %v718
        %v747 = vmul.f32 %v719, %v719
        %v748 = vmul.f32 %v720, %v720
        %v749 = vmul.f32 %v721, %v721
        %v750 = vsub.f32 %v742, %v746
        %v751 = vsub.f32 %v743, %v747
        %v752 = vsub.f32 %v744, %v748
        %v753 = vsub.f32 %v745, %v749
        %v754 = vmax.f32 %v750, 0.0
        %v755 = vmax.f32 %v751, 0.0
        %v756 = vmax.f32 %v752, 0.0
        %v757 = vmax.f32 %v753, 0.0
        %v758 = vsub.f32 %v698, %v718
        %v759 = vsub.f32 %v699, %v718
        %v760 = vsub.f32 %v700, %v719
        %v761 = vsub.f32 %v701, %v719
        %v762 = vsub.f32 %v702, %v720
        %v763 = vsub.f32 %v703, %v720
        %v764 = vsub.f32 %v704, %v721
        %v765 = vsub.f32 %v705, %v721
        %v766 = vadd.f32 %v754, 1e-05
        %v767 = vadd.f32 %v755, 1e-05
        %v768 = vadd.f32 %v756, 1e-05
        %v769 = vadd.f32 %v757, 1e-05
        %v770 = vrsqrt.pop %v766
        %v771 = vrsqrt.pop %v767
        %v772 = vrsqrt.pop %v768
        %v773 = vrsqrt.pop %v769
        %v774 = vmul.f32 %v758, %v770
        %v775 = vmul.f32 %v759, %v770
        %v776 = vmul.f32 %v760, %v771
        %v777 = vmul.f32 %v761, %v771
        %v778 = vmul.f32 %v762, %v772
        %v779 = vmul.f32 %v763, %v772
        %v780 = vmul.f32 %v764, %v773
        %v781 = vmul.f32 %v765, %v773
        %v782 = vld [vmem:[#allocation5] sm:$0xff]
        %v783 = vld [vmem:[#allocation5 + $0x8] sm:$0xff]
        %v784 = vld [vmem:[#allocation5 + $0x10] sm:$0xff]
        %v785 = vld [vmem:[#allocation5 + $0x18] sm:$0xff]
        %v786 = vld [vmem:[#allocation5 + $0x20] sm:$0xff]
        %v787 = vld [vmem:[#allocation5 + $0x28] sm:$0xff]
        %v788 = vld [vmem:[#allocation5 + $0x30] sm:$0xff]
        %v789 = vld [vmem:[#allocation5 + $0x38] sm:$0xff]
        %v790 = vld [vmem:[#allocation5 + $0x40] sm:$0xff]
        %v791 = vld [vmem:[#allocation5 + $0x48] sm:$0xff]
        %v792 = vld [vmem:[#allocation5 + $0x50] sm:$0xff]
        %v793 = vld [vmem:[#allocation5 + $0x58] sm:$0xff]
        %v794 = vld [vmem:[#allocation5 + $0x60] sm:$0xff]
        %v795 = vld [vmem:[#allocation5 + $0x68] sm:$0xff]
        %v796 = vld [vmem:[#allocation5 + $0x70] sm:$0xff]
        %v797 = vld [vmem:[#allocation5 + $0x78] sm:$0xff]
        %v798 = vld [vmem:[#allocation5 + $0x80] sm:$0xff]
        %v799 = vld [vmem:[#allocation5 + $0x88] sm:$0xff]
        %v800 = vld [vmem:[#allocation5 + $0x90] sm:$0xff]
        %v801 = vld [vmem:[#allocation5 + $0x98] sm:$0xff]
        %v802 = vld [vmem:[#allocation5 + $0xa0] sm:$0xff]
        %v803 = vld [vmem:[#allocation5 + $0xa8] sm:$0xff]
        %v804 = vld [vmem:[#allocation5 + $0xb0] sm:$0xff]
        %v805 = vld [vmem:[#allocation5 + $0xb8] sm:$0xff]
        %v806 = vld [vmem:[#allocation5 + $0xc0] sm:$0xff]
        %v807 = vld [vmem:[#allocation5 + $0xc8] sm:$0xff]
        %v808 = vld [vmem:[#allocation5 + $0xd0] sm:$0xff]
        %v809 = vld [vmem:[#allocation5 + $0xd8] sm:$0xff]
        %v810 = vld [vmem:[#allocation5 + $0xe0] sm:$0xff]
        %v811 = vld [vmem:[#allocation5 + $0xe8] sm:$0xff]
        %v812 = vld [vmem:[#allocation5 + $0xf0] sm:$0xff]
        %v813 = vld [vmem:[#allocation5 + $0xf8] sm:$0xff]
        %v814 = vld [vmem:[%s6] sm:$0x1]
        %v816 = vlaneseq
        %v817 = vshrl.u32 %v816, 7
        %v818 = vsub.s32 0, %v817
        %v819 = vrot.slane %v814, %v818
        %821 = vmatprep.subr.mxu0 0.0
        %822 = vmatpush1.msra.mxu0 %v782
        %823 = vmatprep.subr.mxu0 0.0
        %824 = vmatpush1.msra.mxu0 %v783
        %825 = vmatprep.subr.mxu0 0.0
        %826 = vmatpush1.msra.mxu0 %v784
        %827 = vmatprep.subr.mxu0 0.0
        %828 = vmatpush1.msra.mxu0 %v785
        %829 = vmatprep.subr.mxu0 0.0
        %830 = vmatpush1.msra.mxu0 %v786
        %831 = vmatprep.subr.mxu0 0.0
        %832 = vmatpush1.msra.mxu0 %v787
        %833 = vmatprep.subr.mxu0 0.0
        %834 = vmatpush1.msra.mxu0 %v788
        %835 = vmatprep.subr.mxu0 0.0
        %836 = vmatpush1.msra.mxu0 %v789
        %837 = vmatprep.subr.mxu0 0.0
        %838 = vmatpush1.msra.mxu0 %v790
        %839 = vmatprep.subr.mxu0 0.0
        %840 = vmatpush1.msra.mxu0 %v791
        %841 = vmatprep.subr.mxu0 0.0
        %842 = vmatpush1.msra.mxu0 %v792
        %843 = vmatprep.subr.mxu0 0.0
        %844 = vmatpush1.msra.mxu0 %v793
        %845 = vmatprep.subr.mxu0 0.0
        %846 = vmatpush1.msra.mxu0 %v794
        %847 = vmatprep.subr.mxu0 0.0
        %848 = vmatpush1.msra.mxu0 %v795
        %849 = vmatprep.subr.mxu0 0.0
        %850 = vmatpush1.msra.mxu0 %v796
        %851 = vmatprep.subr.mxu0 0.0
        %852 = vmatpush1.msra.mxu0 %v797
        %853 = vmatprep.subr.mxu0 0.0
        %854 = vmatpush1.msra.mxu0 %v798
        %855 = vmatprep.subr.mxu0 0.0
        %856 = vmatpush1.msra.mxu0 %v799
        %857 = vmatprep.subr.mxu0 0.0
        %858 = vmatpush1.msra.mxu0 %v800
        %859 = vmatprep.subr.mxu0 0.0
        %860 = vmatpush1.msra.mxu0 %v801
        %861 = vmatprep.subr.mxu0 0.0
        %862 = vmatpush1.msra.mxu0 %v802
        %863 = vmatprep.subr.mxu0 0.0
        %864 = vmatpush1.msra.mxu0 %v803
        %865 = vmatprep.subr.mxu0 0.0
        %866 = vmatpush1.msra.mxu0 %v804
        %867 = vmatprep.subr.mxu0 0.0
        %868 = vmatpush1.msra.mxu0 %v805
        %869 = vmatprep.subr.mxu0 0.0
        %870 = vmatpush1.msra.mxu0 %v806
        %871 = vmatprep.subr.mxu0 0.0
        %872 = vmatpush1.msra.mxu0 %v807
        %873 = vmatprep.subr.mxu0 0.0
        %874 = vmatpush1.msra.mxu0 %v808
        %875 = vmatprep.subr.mxu0 0.0
        %876 = vmatpush1.msra.mxu0 %v809
        %877 = vmatprep.subr.mxu0 0.0
        %878 = vmatpush1.msra.mxu0 %v810
        %879 = vmatprep.subr.mxu0 0.0
        %880 = vmatpush1.msra.mxu0 %v811
        %881 = vmatprep.subr.mxu0 0.0
        %882 = vmatpush1.msra.mxu0 %v812
        %883 = vmatprep.subr.mxu0 0.0
        %884 = vmatpush1.msra.mxu0 %v813
        %885 = vmatprep.mubr.f32.mxu0 %v775
        %886 = vmatmul.mubr.f32.gmra.mrb[0].mxu0 %v774
        %v887 = vpop.f32.mrb[0].mxu0
        %v888 = vadd.f32 %v819, %v887
        %v889 = vpop.f32.mrb[0].mxu0
        %890 = vmatprep.mubr.f32.mxu0 %v777
        %891 = vmatmul.mubr.f32.gmra.mrb[0].mxu0 %v776
        %v892 = vpop.f32.mrb[0].mxu0
        %v893 = vadd.f32 %v819, %v892
        %v894 = vpop.f32.mrb[0].mxu0
        %895 = vmatprep.mubr.f32.mxu0 %v779
        %896 = vmatmul.mubr.f32.gmra.mrb[0].mxu0 %v778
        %v897 = vpop.f32.mrb[0].mxu0
        %v898 = vadd.f32 %v819, %v897
        %v899 = vpop.f32.mrb[0].mxu0
        %900 = vmatprep.mubr.f32.mxu0 %v781
        %901 = vmatmul.mubr.f32.gmra.mrb[0].mxu0 %v780
        %v902 = vpop.f32.mrb[0].mxu0
        %v903 = vadd.f32 %v819, %v902
        %v904 = vpop.f32.mrb[0].mxu0
        %905 = vdwg.mxu0
        %906 = vmax.xlane.f32.xlu0 %v888
        %v907 = vpop.xlane.xlu0 %906
        %908 = vmax.xlane.f32.xlu0 %v893
        %v909 = vpop.xlane.xlu0 %908
        %910 = vmax.xlane.f32.xlu0 %v898
        %v911 = vpop.xlane.xlu0 %910
        %912 = vmax.xlane.f32.xlu0 %v903
        %v913 = vpop.xlane.xlu0 %912
        %v914 = vsub.f32 %v888, %v907
        %v915 = vsub.f32 %v893, %v909
        %v916 = vsub.f32 %v898, %v911
        %v917 = vsub.f32 %v903, %v913
        %v918 = vmul.f32 %v914, 1.442695
        %v919 = vpow.pop %v918
        %v920 = vmul.f32 %v915, 1.442695
        %v921 = vpow.pop %v920
        %v922 = vmul.f32 %v916, 1.442695
        %v923 = vpow.pop %v922
        %v924 = vmul.f32 %v917, 1.442695
        %v925 = vpow.pop %v924
        %926 = vadd.xlane.f32.xlu0 %v919
        %v927 = vpop.xlane.xlu0 %926
        %928 = vadd.xlane.f32.xlu0 %v921
        %v929 = vpop.xlane.xlu0 %928
        %930 = vadd.xlane.f32.xlu0 %v923
        %v931 = vpop.xlane.xlu0 %930
        %932 = vadd.xlane.f32.xlu0 %v925
        %v933 = vpop.xlane.xlu0 %932
        %v934 = vrcp.pop %v927
        %v935 = vmul.f32 %v919, %v934
        %v936 = vrcp.pop %v929
        %v937 = vmul.f32 %v921, %v936
        %v938 = vrcp.pop %v931
        %v939 = vmul.f32 %v923, %v938
        %v940 = vrcp.pop %v933
        %v941 = vmul.f32 %v925, %v940
        %942 = vst [vmem:[%s302] sm:$0xff] %v935
        %943 = vst [vmem:[%s302 + $0x8] sm:$0xff] %v937
        %944 = vst [vmem:[%s302 + $0x10] sm:$0xff] %v939
        %945 = vst [vmem:[%s302 + $0x18] sm:$0xff] %v941
        %s946 = sand.u32 %s183, 1
        %s947 = scalar_lea.sflag [#allocation4], %s946
        %s948 = sand.u32 %s183, 1
        %s949 = smul.addr %s948, 32
        %s950 = scalar_lea.vmem [#allocation7], %s949
        // Predicated region
        $region57: #{tpu_custom_call.1} parent=47 // pred_check
          %p951 = pneg %p193
        $region58: #{tpu_custom_call.1} parent=47 // pred_check_branch
          %953 = sbr.rel (%p951) target = $region60
        $region59: #{tpu_custom_call.1} parent=47 // pred_region
          %s954 = smul.u32 4, %s23
          %s956 = ssub.s32 512, 512
          %957 = vsyncadd %s947, %s956
          %s958 = smul.addr %s954, 128
          %s959 = scalar_lea.hbm %s7, %s958
          %s960 = sshll.u32 %s950, 4
          %s961 = int_to_ptr.vmem [resolvable:$true] %s960
          %966 = dma.vmem_to_hbm [thread:$0]  %s961, 512, %s959, %s947, 128, 128, 8
        $region60: #{tpu_custom_call.1} parent=47 // pred_fallthru
          _
      $region48: #{tpu_custom_call.1} parent=5 // pred_fallthru
        _
      %p967 = scmp.le.s32.totalorder 2, %s18
      // Predicated region
      $region61: #{tpu_custom_call.1} parent=5 // pred_check
        %p968 = pneg %p967
      $region62: #{tpu_custom_call.1} parent=5 // pred_check_branch
        %970 = sbr.rel (%p968) target = $region64
      $region63: #{tpu_custom_call.1} parent=5 // pred_region
        %s971 = ssub.s32 %s18, 2
        // Predicated region
        $region65: #{tpu_custom_call.1} parent=63 // pred_check
          %p972 = pneg %p199
        $region66: #{tpu_custom_call.1} parent=63 // pred_check_branch
          %974 = sbr.rel (%p972) target = $region68
        $region67: #{tpu_custom_call.1} parent=63 // pred_region
          %s975 = sand.u32 %s184, 1
          %s976 = scalar_lea.sflag [#allocation4], %s975
          %s977 = sand.u32 %s184, 1
          %s978 = smul.addr %s977, 32
          %s979 = scalar_lea.vmem [#allocation7], %s978
          %980 = dma.done %s976, 512
        $region68: #{tpu_custom_call.1} parent=63 // pred_fallthru
          _
      $region64: #{tpu_custom_call.1} parent=5 // pred_fallthru
        _
    $region6: #{tpu_custom_call.1} parent=1 // loop_footer
      %s22 = sadd.s32 1, %s18
    $region7: #{tpu_custom_call.1} parent=1 // loop_footer_branch
      %17 = sbr.rel target = $region3
    $region8: #{tpu_custom_call.1} parent=1 // loop_exit
      _
    %981 = vsyncpa [#allocation3], 1
    %s982 = scalar_lea.sflag [#allocation3], 1
    %983 = vsyncpa %s982, 1
    %984 = vsyncpa [#allocation6], 1
    %985 = vsyncpa [#allocation4], 1
    %s986 = scalar_lea.sflag [#allocation4], 1
    %987 = vsyncpa %s986, 1

</llo_original>
